<compile_context>
chip_gen: v6e
topology: v6e:2x2x1
jax: 0.10.0
libtpu: 0.0.40
codegen_flags: <defaults>
</compile_context>

<pallas_src>
import functools

import jax
import jax.numpy as jnp
from jax import lax
from jax.experimental import pallas as pl
from jax.experimental.pallas import tpu as pltpu


# ---------------------------------------------------------------------------
# Generation-aware VMEM budgets
# ---------------------------------------------------------------------------
_FALLBACK_VMEM_CAP = 64 << 20  # conservative (v7x-sized) if the query fails


def _tpu_vmem_capacity():
    try:
        return int(pltpu.get_tpu_info().vmem_capacity_bytes)
    except Exception:
        return _FALLBACK_VMEM_CAP


def _vmem_budgets():
    """(feature double-buffer budget, scoped-VMEM limit cap) in bytes."""
    cap = _tpu_vmem_capacity()
    if cap >= (100 << 20):
        # v5e / v6e: 128 MiB physical VMEM -> big tiles, big DMAs, fewer steps.
        return 48 << 20, 100 << 20
    # v7x: 64 MiB per TensorCore -> keep headroom for compiler scratch.
    return 20 << 20, 48 << 20


def _choose_hw_tile(ch, hw, itemsize, budget):
    """Largest hw tile (multiple of 128, dividing hw) whose double-buffered
    (ch, thw) feature block stays inside `budget` bytes.  `hw` is already a
    multiple of 128 (the wrapper zero-pads), so this always succeeds."""
    cap = budget // (2 * ch * itemsize)
    cap = max(128, (cap // 128) * 128)       # lane-aligned
    if hw <= cap:
        return hw                            # single tile
    t = cap
    while t >= 256:
        if hw % t == 0:
            return t
        t -= 128
    return 128                               # 128 always divides padded hw


# ---------------------------------------------------------------------------
# Kernel: tiled batched Gram matrix, accumulated into the resident out block
# ---------------------------------------------------------------------------
def _gram_kernel(feat_ref, gram_ref, *, inv_norm, cast_bf16):
    # feat_ref: (1, ch, thw) feature tile of one batch element (native dtype)
    # gram_ref: (1, 1, ch, ch) f32 partial-gram block; its index_map is
    #           constant over the hw grid axis -> resident accumulator.
    k = pl.program_id(2)

    @pl.when(k == 0)
    def _():
        gram_ref[...] = jnp.zeros_like(gram_ref)

    f = feat_ref[0]  # (ch, thw)
    if cast_bf16:
        # Optional bf16 MXU fast path (guarded; changes numerics slightly).
        f = f.astype(jnp.bfloat16)
    # Contract over hw (dim 1 of both operands) — no explicit transpose.
    # TODO(synk): per perf review, check lowered MLIR for a per-step vxpose of
    # the RHS tile at large ch; if present, feed features pre-transposed.
    gram_ref[0, 0] += lax.dot_general(
        f, f,
        dimension_numbers=(((1,), (1,)), ((), ())),
        preferred_element_type=jnp.float32,
    )

    @pl.when(k == pl.num_programs(2) - 1)
    def _():
        gram_ref[...] = gram_ref[...] * inv_norm


def gram_matrix(x, *, hw_tile=None, use_bf16_mxu=False):
    """x: (b, ch, h, w) -> (b, ch, ch) float32 gram matrices (Pallas, tiled)."""
    b, ch, h, w = x.shape
    hw = h * w
    inv_norm = 1.0 / float(ch * hw)          # normalize by the ORIGINAL h*w

    feats = x.reshape(b, ch, hw)
    # Zero-pad hw up to a multiple of 128: the padded zeros contribute nothing
    # to the gram and inv_norm keeps the original hw, so results are unchanged.
    hw_p = ((hw + 127) // 128) * 128
    if hw_p != hw:
        feats = jnp.pad(feats, ((0, 0), (0, 0), (0, hw_p - hw)))
    itemsize = feats.dtype.itemsize

    tile_budget, limit_cap = _vmem_budgets()
    thw = (hw_tile if hw_tile is not None
           else _choose_hw_tile(ch, hw_p, itemsize, tile_budget))
    assert hw_p % thw == 0, "hw tile must divide the (padded) h*w"
    n_hw = hw_p // thw

    # b == 1: split the hw reduction across a leading parallel axis so v7x's
    # second TensorCore gets half the HBM stream.  Negligible cost elsewhere.
    n_split = 1
    if b == 1:
        if n_hw % 2 != 0 and thw % 256 == 0:
            thw //= 2
            n_hw *= 2
        if n_hw % 2 == 0 and n_hw >= 2:
            n_split = 2
    n_hw_sub = n_hw // n_split

    cast_bf16 = bool(use_bf16_mxu) and feats.dtype == jnp.float32

    # Scoped-VMEM budget: double-buffered feature tile + double-buffered gram
    # block + headroom; capped per-generation but NEVER below what the chosen
    # tile actually needs (a caller-supplied hw_tile may exceed the cap).
    needed = 2 * ch * thw * itemsize + 2 * ch * ch * 4 + (4 << 20)
    vmem_limit = int(max(min(max(needed, 32 << 20), limit_cap), needed))

    kernel = functools.partial(_gram_kernel, inv_norm=inv_norm,
                               cast_bf16=cast_bf16)

    partials = pl.pallas_call(
        kernel,
        out_shape=jax.ShapeDtypeStruct((n_split, b, ch, ch), jnp.float32),
        grid=(n_split, b, n_hw_sub),
        in_specs=[pl.BlockSpec(
            (1, ch, thw), lambda s, i, k: (i, 0, s * n_hw_sub + k))],
        out_specs=pl.BlockSpec(
            (1, 1, ch, ch), lambda s, i, k: (s, i, 0, 0)),
        compiler_params=pltpu.CompilerParams(
            dimension_semantics=("parallel", "parallel", "arbitrary"),
            vmem_limit_bytes=vmem_limit,
        ),
    )(feats)

    if n_split == 1:
        return partials[0]
    return partials.sum(axis=0)              # tiny (b, ch, ch) add in JAX


# ---------------------------------------------------------------------------
# Forward: gram (Pallas) + MSE vs target (plain JAX on the small (b,ch,ch))
# ---------------------------------------------------------------------------
def style_loss_forward(x, target_gram):
    """Returns (input_unchanged, gram(x), mse_loss(gram(x), target_gram))."""
    gram = gram_matrix(x)
    loss = jnp.mean((gram - target_gram.astype(jnp.float32)) ** 2)
    return x, gram, loss


class StyleLoss:
    """JAX/Pallas port of the PyTorch StyleLoss module."""

    def __init__(self, target):
        # target: (b, ch, h, w) feature map; gram is "detached" (no grad).
        self.target = jax.lax.stop_gradient(gram_matrix(target))

    def __call__(self, x):
        out, _, loss = style_loss_forward(x, self.target)
        self.loss = loss
        return out


if __name__ == "__main__":
    key = jax.random.PRNGKey(0)
    k_t, k_x, k_y = jax.random.split(key, 3)

    b, ch, h, w = 2, 4, 16, 16
    target = jax.random.normal(k_t, (b, ch, h, w), dtype=jnp.float32)
    x = jax.random.normal(k_x, (b, ch, h, w), dtype=jnp.float32)

    # Pure-JAX reference (same math as the PyTorch module)
    def gram_ref_fn(a):
        bb, cc, hh, ww = a.shape
        f = a.reshape(bb, cc, hh * ww)
        return jnp.einsum("bij,bkj->bik", f, f) / (cc * hh * ww)

    # 1) Module forward: identity output + stashed scalar loss.
    module = StyleLoss(target)
    out = jax.block_until_ready(module(x))
    loss = jax.block_until_ready(module.loss)
    loss_ref = jnp.mean((gram_ref_fn(x) - gram_ref_fn(target)) ** 2)
    assert out.shape == x.shape and jnp.allclose(out, x)
    assert jnp.allclose(loss, loss_ref, rtol=1e-5, atol=1e-6)

    # 2) Tiled hw-reduction path (2 k-steps: 256 hw / 128 tile).
    gram_tiled = jax.block_until_ready(gram_matrix(x, hw_tile=128))
    assert jnp.allclose(gram_tiled, gram_ref_fn(x), rtol=1e-5, atol=1e-6)

    # 3) b == 1 path: exercises the dual-TensorCore hw split (n_split == 2).
    x1 = x[:1]
    gram_b1 = jax.block_until_ready(gram_matrix(x1))
    assert jnp.allclose(gram_b1, gram_ref_fn(x1), rtol=1e-5, atol=1e-6)

    # 4) Non-128-divisible hw: zero-padding path (9x9 -> 81, padded to 128).
    x_odd = jax.random.normal(k_y, (2, 4, 9, 9), dtype=jnp.float32)
    gram_odd = jax.block_until_ready(gram_matrix(x_odd))
    assert jnp.allclose(gram_odd, gram_ref_fn(x_odd), rtol=1e-5, atol=1e-6)

    print("KERNEL_OK")
</pallas_src>

<mosaic_0001>
module attributes {stable_mosaic.version = 11 : i64} {
  func.func @_gram_kernel(%arg0: i32, %arg1: i32, %arg2: i32, %arg3: memref<1x4x256xf32, #tpu.memory_space<vmem>>, %arg4: memref<1x1x4x4xf32, #tpu.memory_space<vmem>>) attributes {dimension_semantics = [#tpu.dimension_semantics<parallel>, #tpu.dimension_semantics<parallel>, #tpu.dimension_semantics<arbitrary>], iteration_bounds = array<i64: 1, 2, 1>, scalar_prefetch = 0 : i64, scratch_operands = 0 : i64, tpu.core_type = #tpu.core_type<tc>, window_params = [{transform_indices = @transform_0, window_bounds = array<i64: 1, 4, 256>}, {transform_indices = @transform_1, window_bounds = array<i64: 1, 1, 4, 4>}]} {
    %c0_i32 = arith.constant 0 : i32
    %0 = arith.cmpi eq, %arg2, %c0_i32 : i32
    %1 = arith.extui %0 : i1 to i32
    %c0_i32_0 = arith.constant 0 : i32
    %2 = arith.cmpi ne, %1, %c0_i32_0 : i32
    scf.if %2 {
      %cst_13 = arith.constant 0.000000e+00 : f32
      %15 = vector.broadcast %cst_13 : f32 to vector<1x1x4x4xf32>
      %c0_14 = arith.constant 0 : index
      %c0_15 = arith.constant 0 : index
      %c0_16 = arith.constant 0 : index
      %c0_17 = arith.constant 0 : index
      %16 = vector.load %arg4[%c0_14, %c0_15, %c0_16, %c0_17] : memref<1x1x4x4xf32, #tpu.memory_space<vmem>>, vector<1x1x4x4xf32>
      tpu.vector_store %arg4[%c0_14, %c0_15, %c0_16, %c0_17], %15 {strides = array<i32>} : memref<1x1x4x4xf32, #tpu.memory_space<vmem>>, vector<1x1x4x4xf32>,
    } else {
    }
    %c0 = arith.constant 0 : index
    %c0_1 = arith.constant 0 : index
    %c0_2 = arith.constant 0 : index
    %3 = vector.load %arg3[%c0, %c0_1, %c0_2] : memref<1x4x256xf32, #tpu.memory_space<vmem>>, vector<1x4x256xf32>
    %4 = vector.shape_cast %3 : vector<1x4x256xf32> to vector<4x256xf32>
    %c0_3 = arith.constant 0 : index
    %c0_4 = arith.constant 0 : index
    %c0_5 = arith.constant 0 : index
    %c0_6 = arith.constant 0 : index
    %5 = vector.load %arg4[%c0_3, %c0_4, %c0_5, %c0_6] : memref<1x1x4x4xf32, #tpu.memory_space<vmem>>, vector<1x1x4x4xf32>
    %6 = vector.shape_cast %5 : vector<1x1x4x4xf32> to vector<4x4xf32>
    %cst = arith.constant dense<0.000000e+00> : vector<4x4xf32>
    %7 = tpu.matmul %4, %4, %cst {dimension_numbers = #tpu.dot_dimension_numbers<[1], [1], [0], [0], [0, 0, 1, 0], [], []>} : vector<4x256xf32>, vector<4x256xf32>, vector<4x4xf32> -> vector<4x4xf32>
    %8 = arith.addf %6, %7 : vector<4x4xf32>
    %c0_7 = arith.constant 0 : index
    %c0_8 = arith.constant 0 : index
    %c0_9 = arith.constant 0 : index
    %c0_10 = arith.constant 0 : index
    %9 = vector.load %arg4[%c0_7, %c0_8, %c0_9, %c0_10] : memref<1x1x4x4xf32, #tpu.memory_space<vmem>>, vector<1x1x4x4xf32>
    %10 = vector.shape_cast %9 : vector<1x1x4x4xf32> to vector<4x4xf32>
    %11 = vector.shape_cast %8 : vector<4x4xf32> to vector<1x1x4x4xf32>
    tpu.vector_store %arg4[%c0_7, %c0_8, %c0_9, %c0_10], %11 {strides = array<i32>} : memref<1x1x4x4xf32, #tpu.memory_space<vmem>>, vector<1x1x4x4xf32>,
    %c0_i32_11 = arith.constant 0 : i32
    %12 = arith.cmpi eq, %arg2, %c0_i32_11 : i32
    %13 = arith.extui %12 : i1 to i32
    %c0_i32_12 = arith.constant 0 : i32
    %14 = arith.cmpi ne, %13, %c0_i32_12 : i32
    scf.if %14 {
      %c0_13 = arith.constant 0 : index
      %c0_14 = arith.constant 0 : index
      %c0_15 = arith.constant 0 : index
      %c0_16 = arith.constant 0 : index
      %15 = vector.load %arg4[%c0_13, %c0_14, %c0_15, %c0_16] : memref<1x1x4x4xf32, #tpu.memory_space<vmem>>, vector<1x1x4x4xf32>
      %cst_17 = arith.constant 9.765625E-4 : f32
      %16 = vector.broadcast %cst_17 : f32 to vector<1x1x4x4xf32>
      %17 = arith.mulf %15, %16 : vector<1x1x4x4xf32>
      %c0_18 = arith.constant 0 : index
      %c0_19 = arith.constant 0 : index
      %c0_20 = arith.constant 0 : index
      %c0_21 = arith.constant 0 : index
      %18 = vector.load %arg4[%c0_18, %c0_19, %c0_20, %c0_21] : memref<1x1x4x4xf32, #tpu.memory_space<vmem>>, vector<1x1x4x4xf32>
      tpu.vector_store %arg4[%c0_18, %c0_19, %c0_20, %c0_21], %17 {strides = array<i32>} : memref<1x1x4x4xf32, #tpu.memory_space<vmem>>, vector<1x1x4x4xf32>,
    } else {
    }
    return
  }
  func.func @transform_0(%arg0: i32, %arg1: i32, %arg2: i32) -> (i32, i32, i32) {
    %c1_i32 = arith.constant 1 : i32
    %0 = arith.muli %arg0, %c1_i32 : i32
    %1 = arith.addi %0, %arg2 : i32
    %c0_i32 = arith.constant 0 : i32
    %c0_i32_0 = arith.constant 0 : i32
    return %arg1, %c0_i32, %1 : i32, i32, i32
  }
  func.func @transform_1(%arg0: i32, %arg1: i32, %arg2: i32) -> (i32, i32, i32, i32) {
    %c0_i32 = arith.constant 0 : i32
    %c0_i32_0 = arith.constant 0 : i32
    %c0_i32_1 = arith.constant 0 : i32
    return %arg0, %arg1, %c0_i32, %c0_i32_0 : i32, i32, i32, i32
  }
}

</mosaic_0001>

<llo_original>
// kernel: tpu_custom_call.1
$region0: #{tpu_custom_call.1}
  #allocation0 [shape = 'u32[]', space=smem, size = 0x4, offset = 0x4, fixed_abs, tag = 'smem constant byte address 0x4 - core index']
  #allocation1 [shape = 'u32[144,128]{1,0:T(1,128)}', space=vmem, size = 0x12000, scoped, tag = 'internal scratch']
  %s0 = inlined_call_operand.hbm [shape: f32[2,4,256], index: 0, kind: input, shape index: {}]
  %s1 = inlined_call_operand.hbm [shape: f32[1,2,4,4], index: 1, kind: output, shape index: {}]
  %s2 = sld [smem:[#allocation0]]
  $region49: #{tpu_custom_call.1} parent=0
    _
  %s4 = ssub.s32 1, %s2
  %s5 = scalar_select 0, %s4, %s2
  $region1: #{tpu_custom_call.1} parent=0
    #allocation2 [shape = 'u8[8192]{0}', space=vmem, size = 0x2000, scoped, tag = 'input window, operand 0']
    #allocation3 [shape = 's32[2]{0}', space=sflag, size = 0x8, scoped, tag = 'scoped memory for tpu_custom_call.1']
    #allocation4 [shape = 's32[2]{0}', space=sflag, size = 0x8, scoped, tag = 'scoped memory for tpu_custom_call.1']
    #allocation5 [shape = 'u8[4096]{0}', space=vmem, size = 0x1000, scoped, tag = 'output window, operand 0']
    %6 = vsyncpa [#allocation3], 0
    %s7 = scalar_lea.sflag [#allocation3], 1
    %8 = vsyncpa %s7, 0
    %9 = vsyncpa [#allocation4], 0
    %s10 = scalar_lea.sflag [#allocation4], 1
    %11 = vsyncpa %s10, 0
    loop: start=0, step=1, limit=4
    $region2: #{tpu_custom_call.1} parent=1 // loop_pre_header
      _
    $region3: #{tpu_custom_call.1} parent=1 // loop_header
      %s13 = sphi 0, %s17
      %p14 = scmp.ge.s32.totalorder %s13, 4
      %s20 = sphi 0, %s39
      %s21 = sphi 0, %s35
      %s22 = sphi 0, %s31
      %s23 = sphi 0, %s20
      %s24 = sphi 0, %s21
      %s25 = sphi 0, %s22
      %s26 = sphi 0, %s23
      %s27 = sphi 0, %s24
      %s28 = sphi 0, %s25
      %s46 = sphi 0, %s48
      %s49 = sphi 0, %s46
      %s50 = sphi 0, %s49
      %s66 = sphi 0, %s50
      %s74 = sphi 0, %s76
      %s77 = sphi 0, %s74
      %s78 = sphi 0, %s77
      %s94 = sphi 0, %s78
    $region4: #{tpu_custom_call.1} parent=1 // loop_header_branch
      %16 = sbr.rel (%p14) target = $region8
    $region5: #{tpu_custom_call.1} parent=1 // loop_body
      %s18 = ssub.s32 %s13, 1
      %s19 = ssub.s32 %s13, 2
      %s29 = sadd.s32 1, %s22
      %p30 = scmp.ge.s32.totalorder %s29, 1
      %s31 = scalar_select %p30, 0, %s29
      %s32 = sadd.s32 1, %s21
      %s33 = scalar_select %p30, %s32, %s21
      %p34 = scmp.ge.s32.totalorder %s33, 2
      %s35 = scalar_select %p34, 0, %s33
      %s36 = sadd.s32 1, %s20
      %s37 = scalar_select %p34, %s36, %s20
      %p38 = scmp.ge.s32.totalorder %s37, 1
      %s39 = scalar_select %p38, 0, %s37
      %s40 = sadd.s32 %s20, %s22
      %s41 = sadd.s32 %s39, %s31
      %s42 = ssub.s32 %s21, %s35
      %s43 = ssub.s32 %s40, %s41
      %s44 = sor.u32 %s42, %s43
      %p45 = scmp.eq.s32.totalorder %s44, 0
      %s47 = sadd.s32 %s46, 1
      %s48 = scalar_select %p45, %s46, %s47
      %p51 = pneg %p45
      %p52 = scmp.eq.s32.totalorder %s13, 1
      %p53 = por %p51, %p52
      %p54 = scmp.ne.s32.totalorder %s46, %s49
      %p55 = scmp.eq.s32.totalorder %s13, 0
      %p56 = por %p54, %p55
      %p57 = scmp.ne.s32.totalorder %s46, %s49
      %p58 = scmp.eq.s32.totalorder %s18, 1
      %p59 = por %p57, %p58
      %p60 = scmp.ne.s32.totalorder %s49, %s50
      %p61 = scmp.eq.s32.totalorder %s18, 0
      %p62 = por %p60, %p61
      %p63 = scmp.ne.s32.totalorder %s49, %s50
      %p64 = scmp.eq.s32.totalorder %s19, 1
      %p65 = por %p63, %p64
      %p67 = scmp.ne.s32.totalorder %s50, %s66
      %p68 = scmp.eq.s32.totalorder %s19, 0
      %p69 = por %p67, %p68
      %s70 = ssub.s32 %s20, %s39
      %s71 = ssub.s32 %s21, %s35
      %s72 = sor.u32 %s70, %s71
      %p73 = scmp.eq.s32.totalorder %s72, 0
      %s75 = sadd.s32 %s74, 1
      %s76 = scalar_select %p73, %s74, %s75
      %p79 = pneg %p73
      %p80 = scmp.eq.s32.totalorder %s13, 1
      %p81 = por %p79, %p80
      %p82 = scmp.ne.s32.totalorder %s74, %s77
      %p83 = scmp.eq.s32.totalorder %s13, 0
      %p84 = por %p82, %p83
      %p85 = scmp.ne.s32.totalorder %s74, %s77
      %p86 = scmp.eq.s32.totalorder %s18, 1
      %p87 = por %p85, %p86
      %p88 = scmp.ne.s32.totalorder %s77, %s78
      %p89 = scmp.eq.s32.totalorder %s18, 0
      %p90 = por %p88, %p89
      %p91 = scmp.ne.s32.totalorder %s77, %s78
      %p92 = scmp.eq.s32.totalorder %s19, 1
      %p93 = por %p91, %p92
      %p95 = scmp.ne.s32.totalorder %s78, %s94
      %p96 = scmp.eq.s32.totalorder %s19, 0
      %p97 = por %p95, %p96
      %p98 = scmp.le.s32.totalorder 1, %s13
      %p99 = scmp.lt.s32.totalorder %s13, 3
      %p100 = pnand %p98, %p99
      %p101 = pneg %p100
      // Predicated region
      $region9: #{tpu_custom_call.1} parent=5 // pred_check
        _
      $region10: #{tpu_custom_call.1} parent=5 // pred_check_branch
        %103 = sbr.rel (%p100) target = $region12
      $region11: #{tpu_custom_call.1} parent=5 // pred_region
        %s104 = ssub.s32 %s13, 1
      $region12: #{tpu_custom_call.1} parent=5 // pred_fallthru
        _
      %p105 = scmp.lt.s32.totalorder %s13, 2
      // Predicated region
      $region13: #{tpu_custom_call.1} parent=5 // pred_check
        %p106 = pneg %p105
      $region14: #{tpu_custom_call.1} parent=5 // pred_check_branch
        %108 = sbr.rel (%p106) target = $region16
      $region15: #{tpu_custom_call.1} parent=5 // pred_region
        // Predicated region
        $region17: #{tpu_custom_call.1} parent=15 // pred_check
          %p109 = pneg %p56
        $region18: #{tpu_custom_call.1} parent=15 // pred_check_branch
          %111 = sbr.rel (%p109) target = $region20
        $region19: #{tpu_custom_call.1} parent=15 // pred_region
          %s112 = sand.u32 %s46, 1
          %s113 = scalar_lea.sflag [#allocation3], %s112
          %s114 = sand.u32 %s46, 1
          %s115 = smul.addr %s114, 8
          %s116 = scalar_lea.vmem [#allocation2], %s115
          %s117 = sadd.s32 %s20, %s22
          %s118 = smul.u32 2, %s117
          %s120 = ssub.s32 128, 128
          %121 = vsyncadd %s113, %s120
          %s122 = smul.addr %s21, 2
          %s123 = sadd.s32 %s118, %s122
          %s124 = smul.addr %s123, 64
          %s125 = scalar_lea.hbm %s0, %s124
          %s127 = sshll.u32 %s116, 4
          %s128 = int_to_ptr.vmem [resolvable:$true] %s127
          %130 = dma.hbm_to_vmem [thread:$0]  %s125, 128, %s128, %s113
        $region20: #{tpu_custom_call.1} parent=15 // pred_fallthru
          _
      $region16: #{tpu_custom_call.1} parent=5 // pred_fallthru
        _
      %p131 = scmp.le.s32.totalorder 1, %s13
      %p132 = scmp.lt.s32.totalorder %s13, 3
      %p133 = pnand %p131, %p132
      %p134 = pneg %p133
      // Predicated region
      $region21: #{tpu_custom_call.1} parent=5 // pred_check
        _
      $region22: #{tpu_custom_call.1} parent=5 // pred_check_branch
        %136 = sbr.rel (%p133) target = $region24
      $region23: #{tpu_custom_call.1} parent=5 // pred_region
        %s137 = ssub.s32 %s13, 1
        %s138 = sand.u32 %s49, 1
        %s139 = scalar_lea.sflag [#allocation3], %s138
        %s140 = sand.u32 %s49, 1
        %s141 = smul.addr %s140, 8
        %s142 = scalar_lea.vmem [#allocation2], %s141
        // Predicated region
        $region25: #{tpu_custom_call.1} parent=23 // pred_check
          %p143 = pneg %p62
        $region26: #{tpu_custom_call.1} parent=23 // pred_check_branch
          %145 = sbr.rel (%p143) target = $region28
        $region27: #{tpu_custom_call.1} parent=23 // pred_region
          %146 = dma.done %s139, 128
        $region28: #{tpu_custom_call.1} parent=23 // pred_fallthru
          _
        %s147 = sand.u32 %s49, 1
        %s148 = scalar_lea.sflag [#allocation3], %s147
        %s149 = sand.u32 %s49, 1
        %s150 = smul.addr %s149, 8
        %s151 = scalar_lea.vmem [#allocation2], %s150
        %p152 = pneg %p62
        %p153 = pneg %p59
        %p154 = pneg %p90
        %p155 = pneg %p87
        %s156 = sand.u32 %s77, 1
        %s157 = scalar_lea.sflag [#allocation4], %s156
        %s158 = sand.u32 %s77, 1
        %s159 = smul.addr %s158, 4
        %s160 = scalar_lea.vmem [#allocation5], %s159
        %s161 = sadd.s32 %s23, %s25
        %s162 = smul.u32 2, %s161
        %p163 = scmp.eq.s32.totalorder %s25, 0
        // Predicated region
        $region29: #{tpu_custom_call.1} parent=23 // pred_check
          %p164 = pneg %p163
        $region30: #{tpu_custom_call.1} parent=23 // pred_check_branch
          %166 = sbr.rel (%p164) target = $region32
        $region31: #{tpu_custom_call.1} parent=23 // pred_region
          %vm167 = vcmask 27648
          %168 = vst.msk [vmem:[%s160] sm:$0xf] %vm167, 0.0
        $region32: #{tpu_custom_call.1} parent=23 // pred_fallthru
          _
        %v169 = vld [vmem:[%s142] sm:$0xff]
        %v170 = vld [vmem:[%s160] sm:$0xf]
        %v172 = vcombine.high %v169, %v169
        %174 = vmatprep.subr.mxu0 0.0
        %175 = vmatpush1.xpose.msra.mxu0 0.0
        %176 = vmatprep.subr.mxu0 0.0
        %177 = vmatpush1.xpose.msra.mxu0 0.0
        %178 = vmatprep.subr.mxu0 0.0
        %179 = vmatpush1.xpose.msra.mxu0 0.0
        %180 = vmatprep.subr.mxu0 0.0
        %181 = vmatpush1.xpose.msra.mxu0 0.0
        %182 = vmatprep.subr.mxu0 0.0
        %183 = vmatpush1.xpose.msra.mxu0 0.0
        %184 = vmatprep.subr.mxu0 0.0
        %185 = vmatpush1.xpose.msra.mxu0 0.0
        %186 = vmatprep.subr.mxu0 0.0
        %187 = vmatpush1.xpose.msra.mxu0 0.0
        %188 = vmatprep.subr.mxu0 0.0
        %189 = vmatpush1.xpose.msra.mxu0 0.0
        %190 = vmatprep.subr.mxu0 0.0
        %191 = vmatpush1.xpose.msra.mxu0 0.0
        %192 = vmatprep.subr.mxu0 0.0
        %193 = vmatpush1.xpose.msra.mxu0 0.0
        %194 = vmatprep.subr.mxu0 0.0
        %195 = vmatpush1.xpose.msra.mxu0 0.0
        %196 = vmatprep.subr.mxu0 0.0
        %197 = vmatpush1.xpose.msra.mxu0 0.0
        %198 = vmatprep.subr.mxu0 0.0
        %199 = vmatpush1.xpose.msra.mxu0 0.0
        %200 = vmatprep.subr.mxu0 0.0
        %201 = vmatpush1.xpose.msra.mxu0 0.0
        %202 = vmatprep.subr.mxu0 0.0
        %203 = vmatpush1.xpose.msra.mxu0 0.0
        %204 = vmatprep.subr.mxu0 %v172
        %205 = vmatpush1.xpose.msra.mxu0 %v169
        %206 = vmatprep.subr.mxu0 0.0
        %207 = vmatpush2.xpose.msra.mxu0 0.0
        %208 = vmatprep.subr.mxu0 0.0
        %209 = vmatpush2.xpose.msra.mxu0 0.0
        %210 = vmatprep.subr.mxu0 0.0
        %211 = vmatpush2.xpose.msra.mxu0 0.0
        %212 = vmatprep.subr.mxu0 0.0
        %213 = vmatpush2.xpose.msra.mxu0 0.0
        %214 = vmatprep.subr.mxu0 0.0
        %215 = vmatpush2.xpose.msra.mxu0 0.0
        %216 = vmatprep.subr.mxu0 0.0
        %217 = vmatpush2.xpose.msra.mxu0 0.0
        %218 = vmatprep.subr.mxu0 0.0
        %219 = vmatpush2.xpose.msra.mxu0 0.0
        %220 = vmatprep.subr.mxu0 0.0
        %221 = vmatpush2.xpose.msra.mxu0 0.0
        %222 = vmatprep.subr.mxu0 0.0
        %223 = vmatpush2.xpose.msra.mxu0 0.0
        %224 = vmatprep.subr.mxu0 0.0
        %225 = vmatpush2.xpose.msra.mxu0 0.0
        %226 = vmatprep.subr.mxu0 0.0
        %227 = vmatpush2.xpose.msra.mxu0 0.0
        %228 = vmatprep.subr.mxu0 0.0
        %229 = vmatpush2.xpose.msra.mxu0 0.0
        %230 = vmatprep.subr.mxu0 0.0
        %231 = vmatpush2.xpose.msra.mxu0 0.0
        %232 = vmatprep.subr.mxu0 0.0
        %233 = vmatpush2.xpose.msra.mxu0 0.0
        %234 = vmatprep.subr.mxu0 0.0
        %235 = vmatpush2.xpose.msra.mxu0 0.0
        %236 = vmatprep.subr.mxu0 0.0
        %237 = vmatpush2.xpose.msra.mxu0 0.0
        %238 = vmatprep.mubr.f32.mxu0 %v172
        %239 = vmatmul.mubr.f32.gmra.mxu0 %v169
        %v240 = vpop.f32.mrf.mxu0
        %v241 = vadd.f32 0.0, %v240
        %v242 = vpop.f32.mrf.mxu0
        %243 = vdwg.mxu0
        %v244 = vadd.f32 %v170, %v241
        %vm245 = vcmask 27648
        %246 = vst.msk [vmem:[%s160] sm:$0xf] %vm245, %v244
        // Predicated region
        $region33: #{tpu_custom_call.1} parent=23 // pred_check
          %p247 = pneg %p163
        $region34: #{tpu_custom_call.1} parent=23 // pred_check_branch
          %249 = sbr.rel (%p247) target = $region36
        $region35: #{tpu_custom_call.1} parent=23 // pred_region
          %v250 = vld [vmem:[%s160] sm:$0xf]
          %v251 = vmul.f32 %v250, 0.0009765625
          %252 = vst.msk [vmem:[%s160] sm:$0xf] %vm245, %v251
        $region36: #{tpu_custom_call.1} parent=23 // pred_fallthru
          _
        %s253 = sand.u32 %s77, 1
        %s254 = scalar_lea.sflag [#allocation4], %s253
        %s255 = sand.u32 %s77, 1
        %s256 = smul.addr %s255, 4
        %s257 = scalar_lea.vmem [#allocation5], %s256
        // Predicated region
        $region37: #{tpu_custom_call.1} parent=23 // pred_check
          %p258 = pneg %p87
        $region38: #{tpu_custom_call.1} parent=23 // pred_check_branch
          %260 = sbr.rel (%p258) target = $region40
        $region39: #{tpu_custom_call.1} parent=23 // pred_region
          %s262 = ssub.s32 64, 64
          %263 = vsyncadd %s254, %s262
          %s264 = smul.addr %s23, 2
          %s265 = sadd.s32 %s24, %s264
          %s266 = smul.addr %s265, 64
          %s267 = scalar_lea.hbm %s1, %s266
          %s269 = sshll.u32 %s257, 4
          %s270 = int_to_ptr.vmem [resolvable:$true] %s269
          %272 = dma.vmem_to_hbm [thread:$0]  %s270, 64, %s267, %s254
        $region40: #{tpu_custom_call.1} parent=23 // pred_fallthru
          _
      $region24: #{tpu_custom_call.1} parent=5 // pred_fallthru
        _
      %p273 = scmp.le.s32.totalorder 2, %s13
      // Predicated region
      $region41: #{tpu_custom_call.1} parent=5 // pred_check
        %p274 = pneg %p273
      $region42: #{tpu_custom_call.1} parent=5 // pred_check_branch
        %276 = sbr.rel (%p274) target = $region44
      $region43: #{tpu_custom_call.1} parent=5 // pred_region
        %s277 = ssub.s32 %s13, 2
        // Predicated region
        $region45: #{tpu_custom_call.1} parent=43 // pred_check
          %p278 = pneg %p93
        $region46: #{tpu_custom_call.1} parent=43 // pred_check_branch
          %280 = sbr.rel (%p278) target = $region48
        $region47: #{tpu_custom_call.1} parent=43 // pred_region
          %s281 = sand.u32 %s78, 1
          %s282 = scalar_lea.sflag [#allocation4], %s281
          %s283 = sand.u32 %s78, 1
          %s284 = smul.addr %s283, 4
          %s285 = scalar_lea.vmem [#allocation5], %s284
          %286 = dma.done %s282, 64
        $region48: #{tpu_custom_call.1} parent=43 // pred_fallthru
          _
      $region44: #{tpu_custom_call.1} parent=5 // pred_fallthru
        _
    $region6: #{tpu_custom_call.1} parent=1 // loop_footer
      %s17 = sadd.s32 1, %s13
    $region7: #{tpu_custom_call.1} parent=1 // loop_footer_branch
      %12 = sbr.rel target = $region3
    $region8: #{tpu_custom_call.1} parent=1 // loop_exit
      _
    %287 = vsyncpa [#allocation3], 1
    %s288 = scalar_lea.sflag [#allocation3], 1
    %289 = vsyncpa %s288, 1
    %290 = vsyncpa [#allocation4], 1
    %s291 = scalar_lea.sflag [#allocation4], 1
    %292 = vsyncpa %s291, 1

</llo_original>
